<compile_context>
chip_gen: v5e
topology: v5e:2x2
jax: 0.10.0
libtpu: 0.0.40
codegen_flags: <defaults>
</compile_context>

<pallas_src>
import math

import jax
import jax.numpy as jnp
from jax import lax
from jax.experimental import pallas as pl
from jax.experimental.pallas import tpu as pltpu

LEAKY_SLOPE = 0.2
LOG_2PI = math.log(2.0 * math.pi)
LANES = 128


# ----------------------------------------------------------------------------
# In-kernel helpers
# ----------------------------------------------------------------------------
def _softplus(x):
    # numerically stable softplus (matches F.softplus with beta=1), f32 math
    return jnp.maximum(x, 0.0) + jnp.log(1.0 + jnp.exp(-jnp.abs(x)))


def _leaky_relu(x):
    return jnp.where(x > 0, x, LEAKY_SLOPE * x)


# ----------------------------------------------------------------------------
# Fused kernel: one block-diagonal MLP stack -> [value | actor_head], then the
# distribution math, all packed into a single lane-dense output slab.
# ----------------------------------------------------------------------------
def _make_kernel(n_lin, act_dim, action_type):
    def kernel(obs_ref, z_ref, *refs):
        out_ref = refs[-1]
        wb = refs[:-1]  # w0, b0, w1, b1, ...

        # Fused (critic ++ actor) MLP: bf16 MXU operands, f32 accumulation,
        # f32 elementwise activations.
        h = obs_ref[...]  # (bm, obs_dim) f32
        for i in range(n_lin):
            w = wb[2 * i][...]       # bf16 (K, N), block-diagonal fused weight
            b = wb[2 * i + 1][...]   # f32  (1, N)
            h = jnp.dot(h.astype(w.dtype), w,
                        preferred_element_type=jnp.float32) + b
            if i < n_lin - 1:
                h = _leaky_relu(h)

        # h = [value | actor_out]  (bm, 1 + actor_out), f32
        value = h[:, 0:1]

        # One dense zero-store, then static slice stores into the packed slab.
        out_ref[...] = jnp.zeros_like(out_ref)
        out_ref[:, 0:1] = value

        if action_type == "continuous":
            # torch: cov = diag(softplus(raw)), dist = MultivariateNormal(mean, cov)
            mean = h[:, 1:1 + act_dim]
            var = _softplus(h[:, 1 + act_dim:1 + 2 * act_dim])
            std = jnp.sqrt(var)
            z = z_ref[...]                          # z ~ N(0, I)
            action = mean + std * z

            logdet = jnp.sum(jnp.log(var), axis=-1, keepdims=True)
            maha = jnp.sum(z * z, axis=-1, keepdims=True)   # == sum(diff^2 / var)
            logprob = -0.5 * (act_dim * LOG_2PI + logdet + maha)
            entropy = 0.5 * (act_dim * (1.0 + LOG_2PI) + logdet)

            out_ref[:, 1:1 + act_dim] = action
            out_ref[:, 1 + act_dim:2 + act_dim] = logprob
            out_ref[:, 2 + act_dim:3 + act_dim] = entropy
        else:
            # log-softmax formulation (no divide, no 0*(-inf) NaN hazard)
            logits = h[:, 1:1 + act_dim]
            m = jnp.max(logits, axis=-1, keepdims=True)
            shifted = logits - m
            logz = jnp.log(jnp.sum(jnp.exp(shifted), axis=-1, keepdims=True))
            log_probs = shifted - logz
            probs = jnp.exp(log_probs)

            # Gumbel-max trick: argmax(log p + g) ~ Categorical(p)
            scores = log_probs + z_ref[...]
            col = lax.broadcasted_iota(jnp.int32, scores.shape, 1)
            smax = jnp.max(scores, axis=-1, keepdims=True)
            action = jnp.min(
                jnp.where(scores == smax, col, jnp.int32(act_dim)),
                axis=-1, keepdims=True)             # (bm, 1) int32

            onehot = (col == action).astype(jnp.float32)
            logprob = jnp.sum(onehot * log_probs, axis=-1, keepdims=True)
            entropy = -jnp.sum(probs * log_probs, axis=-1, keepdims=True)

            out_ref[:, 1:2] = action.astype(jnp.float32)
            out_ref[:, 2:3] = logprob
            out_ref[:, 3:4] = entropy

    return kernel


# ----------------------------------------------------------------------------
# Parameter init (deterministic, PyTorch nn.Linear-style U(-1/sqrt(fan_in), ...))
# ----------------------------------------------------------------------------
def init_mlp_params(key, input_dim, output_dim, hidden_dim, num_layers):
    dims = [input_dim] + [hidden_dim] * (num_layers + 1) + [output_dim]
    params = []
    for i in range(len(dims) - 1):
        key, kw, kb = jax.random.split(key, 3)
        bound = 1.0 / math.sqrt(dims[i])
        w = jax.random.uniform(kw, (dims[i], dims[i + 1]), jnp.float32, -bound, bound)
        b = jax.random.uniform(kb, (1, dims[i + 1]), jnp.float32, -bound, bound)
        params.append((w, b))
    return params, key


def fuse_block_diag(critic_params, actor_params, weight_dtype=jnp.bfloat16):
    """Fuse critic/actor Linear stacks into one block-diagonal stack.

    Layer 0:      W = [W_c | W_a]                       (obs_dim, h_c + h_a)
    Layer 1..L:   W = [[W_c, 0], [0, W_a]]              (block-diagonal)
    Output of the stack is [critic_out | actor_out] columns.
    """
    fused = []
    for i, ((wc, bc), (wa, ba)) in enumerate(zip(critic_params, actor_params)):
        if i == 0:
            w = jnp.concatenate([wc, wa], axis=1)
        else:
            kc, nc = wc.shape
            ka, na = wa.shape
            top = jnp.concatenate([wc, jnp.zeros((kc, na), jnp.float32)], axis=1)
            bot = jnp.concatenate([jnp.zeros((ka, nc), jnp.float32), wa], axis=1)
            w = jnp.concatenate([top, bot], axis=0)
        b = jnp.concatenate([bc, ba], axis=1)
        fused.append((w.astype(weight_dtype), b.astype(jnp.float32)))
    return fused


# ----------------------------------------------------------------------------
# Wrapper equivalent to ActorCritic.forward
# ----------------------------------------------------------------------------
class ActorCriticPallas:
    def __init__(self, obs_dim, act_dim, hidden_dim, num_layers, action_type, key,
                 use_bf16=True):
        if action_type not in ("continuous", "discrete"):
            raise NotImplementedError(f"action_type = {action_type} is not implemented")
        self.obs_dim = obs_dim
        self.act_dim = act_dim
        self.action_type = action_type
        self.n_lin = num_layers + 2

        actor_out = 2 * act_dim if action_type == "continuous" else act_dim
        critic_params, key = init_mlp_params(key, obs_dim, 1, hidden_dim, num_layers)
        actor_params, key = init_mlp_params(key, obs_dim, actor_out, hidden_dim, num_layers)
        wdtype = jnp.bfloat16 if use_bf16 else jnp.float32
        self.fused_params = fuse_block_diag(critic_params, actor_params, wdtype)

        used_cols = (3 + act_dim) if action_type == "continuous" else 4
        self.out_pad = max(LANES, pl.cdiv(used_cols, LANES) * LANES)

    def forward(self, obs, sample_key):
        B = obs.shape[0]
        f32 = jnp.float32
        act_dim = self.act_dim
        obs = obs.astype(f32)

        # Host-side noise draw (keeps jax.random PRNGKey semantics).
        # TODO(synk): could move to in-kernel pltpu.prng_seed/prng_random_bits to
        # drop one HBM input + RNG launch for large rollout batches.
        if self.action_type == "continuous":
            noise = jax.random.normal(sample_key, (B, act_dim), f32)
        else:
            noise = jax.random.gumbel(sample_key, (B, act_dim), f32)

        # Batch tiling: big tiles for real rollout batches, padded tiny batch otherwise.
        if B >= 256:
            bm = 256
        else:
            bm = max(8, pl.cdiv(B, 8) * 8)
        b_pad = pl.cdiv(B, bm) * bm
        if b_pad != B:
            obs_p = jnp.zeros((b_pad, self.obs_dim), f32).at[:B].set(obs)
            noise_p = jnp.zeros((b_pad, act_dim), f32).at[:B].set(noise)
        else:
            obs_p, noise_p = obs, noise

        flat_params = [t for pair in self.fused_params for t in pair]

        in_specs = [
            pl.BlockSpec((bm, self.obs_dim), lambda i: (i, 0)),   # obs tile
            pl.BlockSpec((bm, act_dim), lambda i: (i, 0)),        # noise tile
        ]
        # Weights/biases: full-array blocks, constant index_map -> VMEM-resident.
        for p in flat_params:
            in_specs.append(pl.BlockSpec(p.shape, lambda i: (0, 0)))

        out_spec = pl.BlockSpec((bm, self.out_pad), lambda i: (i, 0))

        flops = 2 * b_pad * sum(int(w.shape[0]) * int(w.shape[1])
                                for w, _ in self.fused_params)
        param_bytes = sum(int(w.size) * w.dtype.itemsize + int(b.size) * 4
                          for w, b in self.fused_params)
        bytes_accessed = int(obs_p.size * 4 + noise_p.size * 4
                             + b_pad * self.out_pad * 4 + param_bytes)
        cost = pl.CostEstimate(flops=int(flops),
                               transcendentals=int(b_pad * act_dim * 4),
                               bytes_accessed=bytes_accessed)

        kernel = _make_kernel(len(self.fused_params), act_dim, self.action_type)

        packed = pl.pallas_call(
            kernel,
            out_shape=jax.ShapeDtypeStruct((b_pad, self.out_pad), f32),
            grid=(b_pad // bm,),
            in_specs=in_specs,
            out_specs=out_spec,
            compiler_params=pltpu.CompilerParams(
                dimension_semantics=("parallel",),      # megacore / 2-TC sharding
                vmem_limit_bytes=32 * 1024 * 1024,      # safe on v5e/v6e/v7x
            ),
            cost_estimate=cost,
        )(obs_p, noise_p, *flat_params)

        packed = packed[:B]
        value = packed[:, 0:1]
        if self.action_type == "continuous":
            action = packed[:, 1:1 + act_dim]
            logprob = packed[:, 1 + act_dim]
            entropy = packed[:, 2 + act_dim]
        else:
            action = packed[:, 1].astype(jnp.int32)     # Categorical.sample() -> (B,)
            logprob = packed[:, 2]
            entropy = packed[:, 3]
        return value, action, logprob, entropy


# ----------------------------------------------------------------------------
# Demo
# ----------------------------------------------------------------------------
if __name__ == "__main__":
    obs_dim, act_dim, hidden_dim, num_layers = 16, 4, 32, 2
    batch = 8

    key = jax.random.PRNGKey(0)
    key, obs_key, samp_key_c, samp_key_d, init_key_c, init_key_d = jax.random.split(key, 6)
    obs = jax.random.normal(obs_key, (batch, obs_dim), jnp.float32)

    # continuous actor-critic
    ac_cont = ActorCriticPallas(obs_dim, act_dim, hidden_dim, num_layers,
                                "continuous", init_key_c)
    v_c, a_c, lp_c, ent_c = ac_cont.forward(obs, samp_key_c)
    jax.block_until_ready((v_c, a_c, lp_c, ent_c))
    assert v_c.shape == (batch, 1) and a_c.shape == (batch, act_dim)
    assert lp_c.shape == (batch,) and ent_c.shape == (batch,)
    assert bool(jnp.all(jnp.isfinite(v_c))) and bool(jnp.all(jnp.isfinite(lp_c)))
    assert bool(jnp.all(jnp.isfinite(a_c))) and bool(jnp.all(jnp.isfinite(ent_c)))

    # discrete actor-critic
    ac_disc = ActorCriticPallas(obs_dim, act_dim, hidden_dim, num_layers,
                                "discrete", init_key_d)
    v_d, a_d, lp_d, ent_d = ac_disc.forward(obs, samp_key_d)
    jax.block_until_ready((v_d, a_d, lp_d, ent_d))
    assert v_d.shape == (batch, 1) and a_d.shape == (batch,) and a_d.dtype == jnp.int32
    assert bool(jnp.all((a_d >= 0) & (a_d < act_dim)))
    assert bool(jnp.all(jnp.isfinite(lp_d))) and bool(jnp.all(ent_d >= -1e-6))

    print("KERNEL_OK")
</pallas_src>

<mosaic_0001>
module attributes {stable_mosaic.version = 11 : i64} {
  func.func @kernel(%arg0: i32, %arg1: memref<8x16xf32, #tpu.memory_space<vmem>>, %arg2: memref<8x4xf32, #tpu.memory_space<vmem>>, %arg3: memref<16x64xbf16, #tpu.memory_space<vmem>>, %arg4: memref<1x64xf32, #tpu.memory_space<vmem>>, %arg5: memref<64x64xbf16, #tpu.memory_space<vmem>>, %arg6: memref<1x64xf32, #tpu.memory_space<vmem>>, %arg7: memref<64x64xbf16, #tpu.memory_space<vmem>>, %arg8: memref<1x64xf32, #tpu.memory_space<vmem>>, %arg9: memref<64x9xbf16, #tpu.memory_space<vmem>>, %arg10: memref<1x9xf32, #tpu.memory_space<vmem>>, %arg11: memref<8x128xf32, #tpu.memory_space<vmem>>) attributes {dimension_semantics = [#tpu.dimension_semantics<parallel>], iteration_bounds = array<i64: 1>, scalar_prefetch = 0 : i64, scratch_operands = 0 : i64, tpu.core_type = #tpu.core_type<tc>, window_params = [{transform_indices = @transform_0, window_bounds = array<i64: 8, 16>}, {transform_indices = @transform_1, window_bounds = array<i64: 8, 4>}, {pipeline_mode = #tpu.pipeline_mode<synchronous>, transform_indices = @transform_2, window_bounds = array<i64: 16, 64>}, {pipeline_mode = #tpu.pipeline_mode<synchronous>, transform_indices = @transform_3, window_bounds = array<i64: 1, 64>}, {pipeline_mode = #tpu.pipeline_mode<synchronous>, transform_indices = @transform_4, window_bounds = array<i64: 64, 64>}, {pipeline_mode = #tpu.pipeline_mode<synchronous>, transform_indices = @transform_5, window_bounds = array<i64: 1, 64>}, {pipeline_mode = #tpu.pipeline_mode<synchronous>, transform_indices = @transform_6, window_bounds = array<i64: 64, 64>}, {pipeline_mode = #tpu.pipeline_mode<synchronous>, transform_indices = @transform_7, window_bounds = array<i64: 1, 64>}, {pipeline_mode = #tpu.pipeline_mode<synchronous>, transform_indices = @transform_8, window_bounds = array<i64: 64, 9>}, {pipeline_mode = #tpu.pipeline_mode<synchronous>, transform_indices = @transform_9, window_bounds = array<i64: 1, 9>}, {transform_indices = @transform_10, window_bounds = array<i64: 8, 128>}]} {
    %c0 = arith.constant 0 : index
    %c0_0 = arith.constant 0 : index
    %0 = vector.load %arg1[%c0, %c0_0] : memref<8x16xf32, #tpu.memory_space<vmem>>, vector<8x16xf32>
    %c0_1 = arith.constant 0 : index
    %c0_2 = arith.constant 0 : index
    %1 = vector.load %arg3[%c0_1, %c0_2] : memref<16x64xbf16, #tpu.memory_space<vmem>>, vector<16x64xbf16>
    %c0_3 = arith.constant 0 : index
    %c0_4 = arith.constant 0 : index
    %2 = vector.load %arg4[%c0_3, %c0_4] : memref<1x64xf32, #tpu.memory_space<vmem>>, vector<1x64xf32>
    %3 = arith.truncf %0 : vector<8x16xf32> to vector<8x16xbf16>
    %cst = arith.constant dense<0.000000e+00> : vector<8x64xf32>
    %4 = tpu.matmul %3, %1, %cst {dimension_numbers = #tpu.dot_dimension_numbers<[1], [0], [0], [1], [0, 0, 1, 1], [], []>} : vector<8x16xbf16>, vector<16x64xbf16>, vector<8x64xf32> -> vector<8x64xf32>
    %5 = vector.broadcast %2 : vector<1x64xf32> to vector<8x64xf32>
    %6 = arith.addf %4, %5 : vector<8x64xf32>
    %cst_5 = arith.constant 0.000000e+00 : f32
    %7 = vector.broadcast %cst_5 : f32 to vector<8x64xf32>
    %8 = arith.cmpf ogt, %6, %7 : vector<8x64xf32>
    %cst_6 = arith.constant 2.000000e-01 : f32
    %9 = vector.broadcast %cst_6 : f32 to vector<8x64xf32>
    %10 = arith.mulf %9, %6 : vector<8x64xf32>
    %11 = arith.select %8, %6, %10 : vector<8x64xi1>, vector<8x64xf32>
    %c0_7 = arith.constant 0 : index
    %c0_8 = arith.constant 0 : index
    %12 = vector.load %arg5[%c0_7, %c0_8] : memref<64x64xbf16, #tpu.memory_space<vmem>>, vector<64x64xbf16>
    %c0_9 = arith.constant 0 : index
    %c0_10 = arith.constant 0 : index
    %13 = vector.load %arg6[%c0_9, %c0_10] : memref<1x64xf32, #tpu.memory_space<vmem>>, vector<1x64xf32>
    %14 = arith.truncf %11 : vector<8x64xf32> to vector<8x64xbf16>
    %cst_11 = arith.constant dense<0.000000e+00> : vector<8x64xf32>
    %15 = tpu.matmul %14, %12, %cst_11 {dimension_numbers = #tpu.dot_dimension_numbers<[1], [0], [0], [1], [0, 0, 1, 1], [], []>} : vector<8x64xbf16>, vector<64x64xbf16>, vector<8x64xf32> -> vector<8x64xf32>
    %16 = vector.broadcast %13 : vector<1x64xf32> to vector<8x64xf32>
    %17 = arith.addf %15, %16 : vector<8x64xf32>
    %cst_12 = arith.constant 0.000000e+00 : f32
    %18 = vector.broadcast %cst_12 : f32 to vector<8x64xf32>
    %19 = arith.cmpf ogt, %17, %18 : vector<8x64xf32>
    %cst_13 = arith.constant 2.000000e-01 : f32
    %20 = vector.broadcast %cst_13 : f32 to vector<8x64xf32>
    %21 = arith.mulf %20, %17 : vector<8x64xf32>
    %22 = arith.select %19, %17, %21 : vector<8x64xi1>, vector<8x64xf32>
    %c0_14 = arith.constant 0 : index
    %c0_15 = arith.constant 0 : index
    %23 = vector.load %arg7[%c0_14, %c0_15] : memref<64x64xbf16, #tpu.memory_space<vmem>>, vector<64x64xbf16>
    %c0_16 = arith.constant 0 : index
    %c0_17 = arith.constant 0 : index
    %24 = vector.load %arg8[%c0_16, %c0_17] : memref<1x64xf32, #tpu.memory_space<vmem>>, vector<1x64xf32>
    %25 = arith.truncf %22 : vector<8x64xf32> to vector<8x64xbf16>
    %cst_18 = arith.constant dense<0.000000e+00> : vector<8x64xf32>
    %26 = tpu.matmul %25, %23, %cst_18 {dimension_numbers = #tpu.dot_dimension_numbers<[1], [0], [0], [1], [0, 0, 1, 1], [], []>} : vector<8x64xbf16>, vector<64x64xbf16>, vector<8x64xf32> -> vector<8x64xf32>
    %27 = vector.broadcast %24 : vector<1x64xf32> to vector<8x64xf32>
    %28 = arith.addf %26, %27 : vector<8x64xf32>
    %cst_19 = arith.constant 0.000000e+00 : f32
    %29 = vector.broadcast %cst_19 : f32 to vector<8x64xf32>
    %30 = arith.cmpf ogt, %28, %29 : vector<8x64xf32>
    %cst_20 = arith.constant 2.000000e-01 : f32
    %31 = vector.broadcast %cst_20 : f32 to vector<8x64xf32>
    %32 = arith.mulf %31, %28 : vector<8x64xf32>
    %33 = arith.select %30, %28, %32 : vector<8x64xi1>, vector<8x64xf32>
    %c0_21 = arith.constant 0 : index
    %c0_22 = arith.constant 0 : index
    %34 = vector.load %arg9[%c0_21, %c0_22] : memref<64x9xbf16, #tpu.memory_space<vmem>>, vector<64x9xbf16>
    %c0_23 = arith.constant 0 : index
    %c0_24 = arith.constant 0 : index
    %35 = vector.load %arg10[%c0_23, %c0_24] : memref<1x9xf32, #tpu.memory_space<vmem>>, vector<1x9xf32>
    %36 = arith.truncf %33 : vector<8x64xf32> to vector<8x64xbf16>
    %cst_25 = arith.constant dense<0.000000e+00> : vector<8x9xf32>
    %37 = tpu.matmul %36, %34, %cst_25 {dimension_numbers = #tpu.dot_dimension_numbers<[1], [0], [0], [1], [0, 0, 1, 1], [], []>} : vector<8x64xbf16>, vector<64x9xbf16>, vector<8x9xf32> -> vector<8x9xf32>
    %38 = vector.broadcast %35 : vector<1x9xf32> to vector<8x9xf32>
    %39 = arith.addf %37, %38 : vector<8x9xf32>
    %40 = vector.extract_strided_slice %39 {offsets = [0, 0], sizes = [8, 1], strides = [1, 1]} : vector<8x9xf32> to vector<8x1xf32>
    %cst_26 = arith.constant 0.000000e+00 : f32
    %41 = vector.broadcast %cst_26 : f32 to vector<8x128xf32>
    %c0_27 = arith.constant 0 : index
    %c0_28 = arith.constant 0 : index
    %42 = vector.load %arg11[%c0_27, %c0_28] : memref<8x128xf32, #tpu.memory_space<vmem>>, vector<8x128xf32>
    tpu.vector_store %arg11[%c0_27, %c0_28], %41 {strides = array<i32>} : memref<8x128xf32, #tpu.memory_space<vmem>>, vector<8x128xf32>,
    %c0_29 = arith.constant 0 : index
    %c0_30 = arith.constant 0 : index
    %43 = vector.load %arg11[%c0_29, %c0_30] : memref<8x128xf32, #tpu.memory_space<vmem>>, vector<8x1xf32>
    tpu.vector_store %arg11[%c0_29, %c0_30], %40 {strides = array<i32>} : memref<8x128xf32, #tpu.memory_space<vmem>>, vector<8x1xf32>,
    %44 = vector.extract_strided_slice %39 {offsets = [0, 1], sizes = [8, 4], strides = [1, 1]} : vector<8x9xf32> to vector<8x4xf32>
    %45 = vector.extract_strided_slice %39 {offsets = [0, 5], sizes = [8, 4], strides = [1, 1]} : vector<8x9xf32> to vector<8x4xf32>
    %cst_31 = arith.constant 0.000000e+00 : f32
    %46 = vector.broadcast %cst_31 : f32 to vector<8x4xf32>
    %47 = arith.maximumf %45, %46 : vector<8x4xf32>
    %48 = math.absf %45 : vector<8x4xf32>
    %cst_32 = arith.constant 0.000000e+00 : f32
    %49 = vector.broadcast %cst_32 : f32 to vector<8x4xf32>
    %50 = arith.subf %49, %48 : vector<8x4xf32>
    %51 = math.exp %50 : vector<8x4xf32>
    %cst_33 = arith.constant 1.000000e+00 : f32
    %52 = vector.broadcast %cst_33 : f32 to vector<8x4xf32>
    %53 = arith.addf %52, %51 : vector<8x4xf32>
    %54 = math.log %53 : vector<8x4xf32>
    %55 = arith.addf %47, %54 : vector<8x4xf32>
    %56 = math.sqrt %55 : vector<8x4xf32>
    %c0_34 = arith.constant 0 : index
    %c0_35 = arith.constant 0 : index
    %57 = vector.load %arg2[%c0_34, %c0_35] : memref<8x4xf32, #tpu.memory_space<vmem>>, vector<8x4xf32>
    %58 = arith.mulf %56, %57 : vector<8x4xf32>
    %59 = arith.addf %44, %58 : vector<8x4xf32>
    %60 = math.log %55 : vector<8x4xf32>
    %cst_36 = arith.constant dense<0.000000e+00> : vector<8xf32>
    %61 = vector.multi_reduction <add>, %60, %cst_36 [1] : vector<8x4xf32> to vector<8xf32>
    %62 = vector.shape_cast %61 : vector<8xf32> to vector<8x1xf32>
    %63 = arith.mulf %57, %57 : vector<8x4xf32>
    %cst_37 = arith.constant dense<0.000000e+00> : vector<8xf32>
    %64 = vector.multi_reduction <add>, %63, %cst_37 [1] : vector<8x4xf32> to vector<8xf32>
    %65 = vector.shape_cast %64 : vector<8xf32> to vector<8x1xf32>
    %cst_38 = arith.constant 7.35150814 : f32
    %66 = vector.broadcast %cst_38 : f32 to vector<8x1xf32>
    %67 = arith.addf %66, %62 : vector<8x1xf32>
    %68 = arith.addf %67, %65 : vector<8x1xf32>
    %cst_39 = arith.constant -5.000000e-01 : f32
    %69 = vector.broadcast %cst_39 : f32 to vector<8x1xf32>
    %70 = arith.mulf %69, %68 : vector<8x1xf32>
    %cst_40 = arith.constant 11.3515081 : f32
    %71 = vector.broadcast %cst_40 : f32 to vector<8x1xf32>
    %72 = arith.addf %71, %62 : vector<8x1xf32>
    %cst_41 = arith.constant 5.000000e-01 : f32
    %73 = vector.broadcast %cst_41 : f32 to vector<8x1xf32>
    %74 = arith.mulf %73, %72 : vector<8x1xf32>
    %c0_42 = arith.constant 0 : index
    %c1 = arith.constant 1 : index
    %75 = vector.load %arg11[%c0_42, %c1] : memref<8x128xf32, #tpu.memory_space<vmem>>, vector<8x4xf32>
    tpu.vector_store %arg11[%c0_42, %c1], %59 {strides = array<i32>} : memref<8x128xf32, #tpu.memory_space<vmem>>, vector<8x4xf32>,
    %c0_43 = arith.constant 0 : index
    %c5 = arith.constant 5 : index
    %76 = vector.load %arg11[%c0_43, %c5] : memref<8x128xf32, #tpu.memory_space<vmem>>, vector<8x1xf32>
    tpu.vector_store %arg11[%c0_43, %c5], %70 {strides = array<i32>} : memref<8x128xf32, #tpu.memory_space<vmem>>, vector<8x1xf32>,
    %c0_44 = arith.constant 0 : index
    %c6 = arith.constant 6 : index
    %77 = vector.load %arg11[%c0_44, %c6] : memref<8x128xf32, #tpu.memory_space<vmem>>, vector<8x1xf32>
    tpu.vector_store %arg11[%c0_44, %c6], %74 {strides = array<i32>} : memref<8x128xf32, #tpu.memory_space<vmem>>, vector<8x1xf32>,
    return
  }
  func.func @transform_0(%arg0: i32) -> (i32, i32) {
    %c0_i32 = arith.constant 0 : i32
    %c0_i32_0 = arith.constant 0 : i32
    return %arg0, %c0_i32 : i32, i32
  }
  func.func @transform_1(%arg0: i32) -> (i32, i32) {
    %c0_i32 = arith.constant 0 : i32
    %c0_i32_0 = arith.constant 0 : i32
    return %arg0, %c0_i32 : i32, i32
  }
  func.func @transform_2(%arg0: i32) -> (i32, i32) {
    %c0_i32 = arith.constant 0 : i32
    %c0_i32_0 = arith.constant 0 : i32
    %c0_i32_1 = arith.constant 0 : i32
    return %c0_i32, %c0_i32_0 : i32, i32
  }
  func.func @transform_3(%arg0: i32) -> (i32, i32) {
    %c0_i32 = arith.constant 0 : i32
    %c0_i32_0 = arith.constant 0 : i32
    %c0_i32_1 = arith.constant 0 : i32
    return %c0_i32, %c0_i32_0 : i32, i32
  }
  func.func @transform_4(%arg0: i32) -> (i32, i32) {
    %c0_i32 = arith.constant 0 : i32
    %c0_i32_0 = arith.constant 0 : i32
    %c0_i32_1 = arith.constant 0 : i32
    return %c0_i32, %c0_i32_0 : i32, i32
  }
  func.func @transform_5(%arg0: i32) -> (i32, i32) {
    %c0_i32 = arith.constant 0 : i32
    %c0_i32_0 = arith.constant 0 : i32
    %c0_i32_1 = arith.constant 0 : i32
    return %c0_i32, %c0_i32_0 : i32, i32
  }
  func.func @transform_6(%arg0: i32) -> (i32, i32) {
    %c0_i32 = arith.constant 0 : i32
    %c0_i32_0 = arith.constant 0 : i32
    %c0_i32_1 = arith.constant 0 : i32
    return %c0_i32, %c0_i32_0 : i32, i32
  }
  func.func @transform_7(%arg0: i32) -> (i32, i32) {
    %c0_i32 = arith.constant 0 : i32
    %c0_i32_0 = arith.constant 0 : i32
    %c0_i32_1 = arith.constant 0 : i32
    return %c0_i32, %c0_i32_0 : i32, i32
  }
  func.func @transform_8(%arg0: i32) -> (i32, i32) {
    %c0_i32 = arith.constant 0 : i32
    %c0_i32_0 = arith.constant 0 : i32
    %c0_i32_1 = arith.constant 0 : i32
    return %c0_i32, %c0_i32_0 : i32, i32
  }
  func.func @transform_9(%arg0: i32) -> (i32, i32) {
    %c0_i32 = arith.constant 0 : i32
    %c0_i32_0 = arith.constant 0 : i32
    %c0_i32_1 = arith.constant 0 : i32
    return %c0_i32, %c0_i32_0 : i32, i32
  }
  func.func @transform_10(%arg0: i32) -> (i32, i32) {
    %c0_i32 = arith.constant 0 : i32
    %c0_i32_0 = arith.constant 0 : i32
    return %arg0, %c0_i32 : i32, i32
  }
}

</mosaic_0001>

<llo_original>
// kernel: tpu_custom_call.1
$region0: #{tpu_custom_call.1}
  #allocation0 [shape = 'u32[]', space=smem, size = 0x4, offset = 0x4, fixed_abs, tag = 'smem constant byte address 0x4 - core index']
  #allocation1 [shape = 'u32[72,128]{1,0:T(1,128)}', space=vmem, size = 0x9000, scoped, tag = 'internal scratch']
  %s0 = inlined_call_operand.vmem [shape: f32[8,16], index: 0, kind: input, shape index: {}]
  %s1 = inlined_call_operand.vmem [shape: f32[8,4], index: 1, kind: input, shape index: {}]
  %s2 = inlined_call_operand.vmem [shape: bf16[16,64], index: 2, kind: input, shape index: {}]
  %s3 = inlined_call_operand.hbm [shape: f32[1,64], index: 3, kind: input, shape index: {}]
  %s4 = inlined_call_operand.vmem [shape: bf16[64,64], index: 4, kind: input, shape index: {}]
  %s5 = inlined_call_operand.hbm [shape: f32[1,64], index: 5, kind: input, shape index: {}]
  %s6 = inlined_call_operand.hbm [shape: bf16[64,64], index: 6, kind: input, shape index: {}]
  %s7 = inlined_call_operand.vmem [shape: f32[1,64], index: 7, kind: input, shape index: {}]
  %s8 = inlined_call_operand.vmem [shape: bf16[64,9], index: 8, kind: input, shape index: {}]
  %s9 = inlined_call_operand.vmem [shape: f32[1,9], index: 9, kind: input, shape index: {}]
  %s10 = inlined_call_operand.hbm [shape: f32[8,128], index: 10, kind: output, shape index: {}]
  %s11 = sld [smem:[#allocation0]]
  $region62: #{tpu_custom_call.1} parent=0
    _
  %s13 = ssub.s32 1, %s11
  %s14 = scalar_select 0, %s13, %s11
  $region1: #{tpu_custom_call.1} parent=0
    #allocation2 [shape = 'u8[512]{0}', space=vmem, size = 0x400, scoped, tag = 'input window, operand 3, single buffered']
    #allocation3 [shape = 's32[1]{0}', space=sflag, size = 0x4, scoped, tag = 'scoped memory for tpu_custom_call.1']
    #allocation4 [shape = 's32[1]{0}', space=sflag, size = 0x4, scoped, tag = 'scoped memory for tpu_custom_call.1']
    #allocation5 [shape = 'u8[512]{0}', space=vmem, size = 0x400, scoped, tag = 'input window, operand 5, single buffered']
    #allocation6 [shape = 's32[1]{0}', space=sflag, size = 0x4, scoped, tag = 'scoped memory for tpu_custom_call.1']
    #allocation7 [shape = 'u8[16384]{0}', space=vmem, size = 0x4000, scoped, tag = 'input window, operand 6, single buffered']
    #allocation8 [shape = 'u8[4096]{0}', space=vmem, size = 0x1000, scoped, tag = 'output window, operand 0, single buffered']
    %15 = vsyncpa [#allocation3], 0
    %16 = vsyncpa [#allocation6], 0
    %17 = vsyncpa [#allocation4], 0
    // Predicated region
    $region2: #{tpu_custom_call.1} parent=1 // pred_check
      _
    $region3: #{tpu_custom_call.1} parent=1 // pred_check_branch
      %19 = sbr.rel (0) target = $region5
    $region4: #{tpu_custom_call.1} parent=1 // pred_region
      _
    $region5: #{tpu_custom_call.1} parent=1 // pred_fallthru
      _
    // Predicated region
    $region6: #{tpu_custom_call.1} parent=1 // pred_check
      _
    $region7: #{tpu_custom_call.1} parent=1 // pred_check_branch
      %21 = sbr.rel (0) target = $region9
    $region8: #{tpu_custom_call.1} parent=1 // pred_region
      _
    $region9: #{tpu_custom_call.1} parent=1 // pred_fallthru
      _
    // Predicated region
    $region10: #{tpu_custom_call.1} parent=1 // pred_check
      _
    $region11: #{tpu_custom_call.1} parent=1 // pred_check_branch
      %23 = sbr.rel (0) target = $region13
    $region12: #{tpu_custom_call.1} parent=1 // pred_region
      _
    $region13: #{tpu_custom_call.1} parent=1 // pred_fallthru
      _
    // Predicated region
    $region14: #{tpu_custom_call.1} parent=1 // pred_check
      _
    $region15: #{tpu_custom_call.1} parent=1 // pred_check_branch
      %25 = sbr.rel (0) target = $region17
    $region16: #{tpu_custom_call.1} parent=1 // pred_region
      %27 = vsyncadd [#allocation3], 0
      %s29 = sshll.u32 %s3, 4
      %s30 = int_to_ptr.hbm [resolvable:$true] %s29
      %s31 = sshll.u32 [#allocation2], 4
      %s32 = int_to_ptr.vmem [resolvable:$true] %s31
      %34 = dma.hbm_to_vmem [thread:$0]  %s30, 16, %s32, [#allocation3]
    $region17: #{tpu_custom_call.1} parent=1 // pred_fallthru
      _
    // Predicated region
    $region18: #{tpu_custom_call.1} parent=1 // pred_check
      _
    $region19: #{tpu_custom_call.1} parent=1 // pred_check_branch
      %36 = sbr.rel (0) target = $region21
    $region20: #{tpu_custom_call.1} parent=1 // pred_region
      _
    $region21: #{tpu_custom_call.1} parent=1 // pred_fallthru
      _
    // Predicated region
    $region22: #{tpu_custom_call.1} parent=1 // pred_check
      _
    $region23: #{tpu_custom_call.1} parent=1 // pred_check_branch
      %38 = sbr.rel (0) target = $region25
    $region24: #{tpu_custom_call.1} parent=1 // pred_region
      %40 = vsyncadd [#allocation6], 0
      %s42 = sshll.u32 %s5, 4
      %s43 = int_to_ptr.hbm [resolvable:$true] %s42
      %s44 = sshll.u32 [#allocation5], 4
      %s45 = int_to_ptr.vmem [resolvable:$true] %s44
      %47 = dma.hbm_to_vmem [thread:$0]  %s43, 16, %s45, [#allocation6]
    $region25: #{tpu_custom_call.1} parent=1 // pred_fallthru
      _
    // Predicated region
    $region26: #{tpu_custom_call.1} parent=1 // pred_check
      _
    $region27: #{tpu_custom_call.1} parent=1 // pred_check_branch
      %49 = sbr.rel (0) target = $region29
    $region28: #{tpu_custom_call.1} parent=1 // pred_region
      %51 = vsyncadd [#allocation6], 0
      %s52 = sshll.u32 %s6, 4
      %s53 = int_to_ptr.hbm [resolvable:$true] %s52
      %s54 = sshll.u32 [#allocation7], 4
      %s55 = int_to_ptr.vmem [resolvable:$true] %s54
      %60 = dma.hbm_to_vmem [thread:$0]  %s53, 512, %s55, [#allocation6], 64, 64, 4
    $region29: #{tpu_custom_call.1} parent=1 // pred_fallthru
      _
    // Predicated region
    $region30: #{tpu_custom_call.1} parent=1 // pred_check
      _
    $region31: #{tpu_custom_call.1} parent=1 // pred_check_branch
      %62 = sbr.rel (0) target = $region33
    $region32: #{tpu_custom_call.1} parent=1 // pred_region
      _
    $region33: #{tpu_custom_call.1} parent=1 // pred_fallthru
      _
    // Predicated region
    $region34: #{tpu_custom_call.1} parent=1 // pred_check
      _
    $region35: #{tpu_custom_call.1} parent=1 // pred_check_branch
      %64 = sbr.rel (0) target = $region37
    $region36: #{tpu_custom_call.1} parent=1 // pred_region
      _
    $region37: #{tpu_custom_call.1} parent=1 // pred_fallthru
      _
    // Predicated region
    $region38: #{tpu_custom_call.1} parent=1 // pred_check
      _
    $region39: #{tpu_custom_call.1} parent=1 // pred_check_branch
      %66 = sbr.rel (0) target = $region41
    $region40: #{tpu_custom_call.1} parent=1 // pred_region
      _
    $region41: #{tpu_custom_call.1} parent=1 // pred_fallthru
      _
    // Predicated region
    $region42: #{tpu_custom_call.1} parent=1 // pred_check
      _
    $region43: #{tpu_custom_call.1} parent=1 // pred_check_branch
      %68 = sbr.rel (0) target = $region45
    $region44: #{tpu_custom_call.1} parent=1 // pred_region
      %70 = dma.done [#allocation3], 16
    $region45: #{tpu_custom_call.1} parent=1 // pred_fallthru
      _
    // Predicated region
    $region46: #{tpu_custom_call.1} parent=1 // pred_check
      _
    $region47: #{tpu_custom_call.1} parent=1 // pred_check_branch
      %72 = sbr.rel (0) target = $region49
    $region48: #{tpu_custom_call.1} parent=1 // pred_region
      %74 = dma.done [#allocation6], 16
    $region49: #{tpu_custom_call.1} parent=1 // pred_fallthru
      _
    // Predicated region
    $region50: #{tpu_custom_call.1} parent=1 // pred_check
      _
    $region51: #{tpu_custom_call.1} parent=1 // pred_check_branch
      %76 = sbr.rel (0) target = $region53
    $region52: #{tpu_custom_call.1} parent=1 // pred_region
      %78 = dma.done [#allocation6], 512
    $region53: #{tpu_custom_call.1} parent=1 // pred_fallthru
      _
    %v80 = vld [vmem:[%s0] sm:$0xff]
    %v81 = vld [vmem:[%s2] sm:$0xf]
    %v82 = vld [vmem:[%s2 + $0x4] sm:$0xf]
    %v83 = vld [vmem:[#allocation2] sm:$0x1]
    %v84 = vpack.c.bf16 %v80, %v80
    %v86 = vperm.slane %v83, 0
    %v90 = vunpack.c.l.b16 %v81
    %v91 = vunpack.c.l.b16 %v82
    %v92 = vpack.c.b16 %v91, %v90
    %vm94 = vcmask 130048
    %v96 = vsel %vm94, %v84, 0
    %98 = vmatpush.bf16.msra.mxu0 0
    %99 = vmatpush.bf16.msra.mxu0 0
    %100 = vmatpush.bf16.msra.mxu0 0
    %101 = vmatpush.bf16.msra.mxu0 0
    %102 = vmatpush.bf16.msra.mxu0 0
    %103 = vmatpush.bf16.msra.mxu0 0
    %104 = vmatpush.bf16.msra.mxu0 0
    %105 = vmatpush.bf16.msra.mxu0 %v92
    %106 = vmatmul.bf16.gmra.mxu0 %v96
    %v107 = vpop.f32.mrf.mxu0
    %v108 = vadd.f32 %v86, %v107
    %v109 = vpop.f32.mrf.mxu0
    %110 = vdwg.mxu0
    %vm111 = vcmp.gt.f32.partialorder %v108, 0.0
    %v112 = vmul.f32 %v108, 0.2
    %v113 = vsel %vm111, %v108, %v112
    %v114 = vld [vmem:[%s4] sm:$0xf]
    %v115 = vld [vmem:[%s4 + $0x4] sm:$0xf]
    %v116 = vld [vmem:[%s4 + $0x8] sm:$0xf]
    %v117 = vld [vmem:[%s4 + $0xc] sm:$0xf]
    %v118 = vld [vmem:[%s4 + $0x10] sm:$0xf]
    %v119 = vld [vmem:[%s4 + $0x14] sm:$0xf]
    %v120 = vld [vmem:[%s4 + $0x18] sm:$0xf]
    %v121 = vld [vmem:[%s4 + $0x1c] sm:$0xf]
    %v122 = vld [vmem:[#allocation5] sm:$0x1]
    %v123 = vpack.c.bf16 %v113, %v113
    %v125 = vperm.slane %v122, 0
    %v135 = vunpack.c.l.b16 %v114
    %v136 = vunpack.c.l.b16 %v115
    %v137 = vunpack.c.l.b16 %v116
    %v138 = vunpack.c.l.b16 %v117
    %v139 = vunpack.c.l.b16 %v118
    %v140 = vunpack.c.l.b16 %v119
    %v141 = vunpack.c.l.b16 %v120
    %v142 = vunpack.c.l.b16 %v121
    %v143 = vpack.c.b16 %v136, %v135
    %v144 = vpack.c.b16 %v138, %v137
    %v145 = vpack.c.b16 %v140, %v139
    %v146 = vpack.c.b16 %v142, %v141
    %vm151 = vcmask 523264
    %v153 = vsel %vm151, %v123, 0
    %155 = vmatpush.bf16.msra.mxu0 0
    %156 = vmatpush.bf16.msra.mxu0 0
    %157 = vmatpush.bf16.msra.mxu0 0
    %158 = vmatpush.bf16.msra.mxu0 0
    %159 = vmatpush.bf16.msra.mxu0 %v146
    %160 = vmatpush.bf16.msra.mxu0 %v145
    %161 = vmatpush.bf16.msra.mxu0 %v144
    %162 = vmatpush.bf16.msra.mxu0 %v143
    %163 = vmatmul.bf16.gmra.mxu0 %v153
    %v164 = vpop.f32.mrf.mxu0
    %v165 = vadd.f32 %v125, %v164
    %v166 = vpop.f32.mrf.mxu0
    %167 = vdwg.mxu0
    %vm168 = vcmp.gt.f32.partialorder %v165, 0.0
    %v169 = vmul.f32 %v165, 0.2
    %v170 = vsel %vm168, %v165, %v169
    %v171 = vld [vmem:[#allocation7] sm:$0xf]
    %v172 = vld [vmem:[#allocation7 + $0x4] sm:$0xf]
    %v173 = vld [vmem:[#allocation7 + $0x8] sm:$0xf]
    %v174 = vld [vmem:[#allocation7 + $0xc] sm:$0xf]
    %v175 = vld [vmem:[#allocation7 + $0x10] sm:$0xf]
    %v176 = vld [vmem:[#allocation7 + $0x14] sm:$0xf]
    %v177 = vld [vmem:[#allocation7 + $0x18] sm:$0xf]
    %v178 = vld [vmem:[#allocation7 + $0x1c] sm:$0xf]
    %v179 = vld [vmem:[%s7] sm:$0x1]
    %v180 = vpack.c.bf16 %v170, %v170
    %v182 = vperm.slane %v179, 0
    %v192 = vunpack.c.l.b16 %v171
    %v193 = vunpack.c.l.b16 %v172
    %v194 = vunpack.c.l.b16 %v173
    %v195 = vunpack.c.l.b16 %v174
    %v196 = vunpack.c.l.b16 %v175
    %v197 = vunpack.c.l.b16 %v176
    %v198 = vunpack.c.l.b16 %v177
    %v199 = vunpack.c.l.b16 %v178
    %v200 = vpack.c.b16 %v193, %v192
    %v201 = vpack.c.b16 %v195, %v194
    %v202 = vpack.c.b16 %v197, %v196
    %v203 = vpack.c.b16 %v199, %v198
    %v209 = vsel %vm151, %v180, 0
    %211 = vmatpush.bf16.msra.mxu0 0
    %212 = vmatpush.bf16.msra.mxu0 0
    %213 = vmatpush.bf16.msra.mxu0 0
    %214 = vmatpush.bf16.msra.mxu0 0
    %215 = vmatpush.bf16.msra.mxu0 %v203
    %216 = vmatpush.bf16.msra.mxu0 %v202
    %217 = vmatpush.bf16.msra.mxu0 %v201
    %218 = vmatpush.bf16.msra.mxu0 %v200
    %219 = vmatmul.bf16.gmra.mxu0 %v209
    %v220 = vpop.f32.mrf.mxu0
    %v221 = vadd.f32 %v182, %v220
    %v222 = vpop.f32.mrf.mxu0
    %223 = vdwg.mxu0
    %vm224 = vcmp.gt.f32.partialorder %v221, 0.0
    %v225 = vmul.f32 %v221, 0.2
    %v226 = vsel %vm224, %v221, %v225
    %v227 = vld [vmem:[%s8] sm:$0xf]
    %v228 = vld [vmem:[%s8 + $0x4] sm:$0xf]
    %v229 = vld [vmem:[%s8 + $0x8] sm:$0xf]
    %v230 = vld [vmem:[%s8 + $0xc] sm:$0xf]
    %v231 = vld [vmem:[%s8 + $0x10] sm:$0xf]
    %v232 = vld [vmem:[%s8 + $0x14] sm:$0xf]
    %v233 = vld [vmem:[%s8 + $0x18] sm:$0xf]
    %v234 = vld [vmem:[%s8 + $0x1c] sm:$0xf]
    %v235 = vld [vmem:[%s9] sm:$0x1]
    %v236 = vpack.c.bf16 %v226, %v226
    %v238 = vperm.slane %v235, 0
    %v248 = vunpack.c.l.b16 %v227
    %v249 = vunpack.c.l.b16 %v228
    %v250 = vunpack.c.l.b16 %v229
    %v251 = vunpack.c.l.b16 %v230
    %v252 = vunpack.c.l.b16 %v231
    %v253 = vunpack.c.l.b16 %v232
    %v254 = vunpack.c.l.b16 %v233
    %v255 = vunpack.c.l.b16 %v234
    %v256 = vpack.c.b16 %v249, %v248
    %v257 = vpack.c.b16 %v251, %v250
    %v258 = vpack.c.b16 %v253, %v252
    %v259 = vpack.c.b16 %v255, %v254
    %v265 = vsel %vm151, %v236, 0
    %267 = vmatpush.bf16.msra.mxu0 0
    %268 = vmatpush.bf16.msra.mxu0 0
    %269 = vmatpush.bf16.msra.mxu0 0
    %270 = vmatpush.bf16.msra.mxu0 0
    %271 = vmatpush.bf16.msra.mxu0 %v259
    %272 = vmatpush.bf16.msra.mxu0 %v258
    %273 = vmatpush.bf16.msra.mxu0 %v257
    %274 = vmatpush.bf16.msra.mxu0 %v256
    %275 = vmatmul.bf16.gmra.mxu0 %v265
    %v276 = vpop.f32.mrf.mxu0
    %v277 = vadd.f32 %v238, %v276
    %v278 = vpop.f32.mrf.mxu0
    %279 = vdwg.mxu0
    %280 = vst [vmem:[#allocation8] sm:$0xff] 0.0
    %vm281 = vcmask 7168
    %282 = vst.msk [vmem:[#allocation8] sm:$0xff] %vm281, %v277
    %v283 = vmax.f32 %v277, 0.0
    %v284 = vand.u32 2147483647, %v277
    %v285 = vsub.f32 0.0, %v284
    %v286 = vmul.f32 %v285, 1.442695
    %v287 = vpow.pop %v286
    %v288 = vadd.f32 %v287, 1.0
    %v289 = vlog2.pop %v288
    %v290 = vmul.f32 %v289, 0.6931472
    %v291 = vadd.f32 %v283, %v290
    %v292 = vrsqrt.pop %v291
    %v293 = vmul.f32 %v292, %v291
    %v294 = vmul.f32 %v293, %v292
    %v295 = vmul.f32 0.5, %v294
    %v296 = vsub.f32 1.5, %v295
    %v297 = vmul.f32 %v292, %v296
    %v298 = vmul.f32 %v291, %v297
    %vm299 = vcmp.eq.f32.partialorder %v291, inf
    %v300 = vsel %vm299, %v291, %v298
    %vm301 = vcmp.eq.f32.partialorder %v291, 0.0
    %v302 = vand.u32 %v291, 2147483648
    %v303 = vsel %vm301, %v302, %v300
    %v304 = vld [vmem:[%s1] sm:$0xff]
    %306 = vrot.lane.b32.xlu0 %v304, 5
    %v307 = vpop.permute.xlu0 %306
    %v309 = vmul.f32 %v303, %v307
    %311 = vrot.lane.b32.xlu0 %v309, 124
    %v312 = vpop.permute.xlu0 %311
    %v314 = vadd.f32 %v277, %v312
    %v315 = vlog2.pop %v291
    %v316 = vmul.f32 %v315, 0.6931472
    %318 = vrot.lane.b32.xlu0 %v316, 123
    %v319 = vpop.permute.xlu0 %318
    %vm321 = vcmask 31744
    %v322 = vsel %vm321, %v319, 0.0
    %323 = vadd.xlane.f32.xlu0 %v322
    %v324 = vpop.xlane.xlu0 %323
    %v325 = vmul.f32 %v304, %v304
    %v326 = vsel %vm321, %v325, 0.0
    %327 = vadd.xlane.f32.xlu0 %v326
    %v328 = vpop.xlane.xlu0 %327
    %v329 = vadd.f32 %v324, 7.351508
    %v330 = vadd.f32 %v329, %v328
    %v331 = vmul.f32 %v330, -0.5
    %v332 = vadd.f32 %v324, 11.351508
    %v333 = vmul.f32 %v332, 0.5
    %vm334 = vcmask 39944
    %335 = vst.msk [vmem:[#allocation8] sm:$0xff] %vm334, %v314
    %vm336 = vcmask 48168
    %337 = vst.msk [vmem:[#allocation8] sm:$0xff] %vm336, %v331
    %vm338 = vcmask 56368
    %339 = vst.msk [vmem:[#allocation8] sm:$0xff] %vm338, %v333
    // Predicated region
    $region54: #{tpu_custom_call.1} parent=1 // pred_check
      _
    $region55: #{tpu_custom_call.1} parent=1 // pred_check_branch
      %341 = sbr.rel (0) target = $region57
    $region56: #{tpu_custom_call.1} parent=1 // pred_region
      %343 = vsyncadd [#allocation4], 0
      %s345 = sshll.u32 [#allocation8], 4
      %s346 = int_to_ptr.vmem [resolvable:$true] %s345
      %s347 = sshll.u32 %s10, 4
      %s348 = int_to_ptr.hbm [resolvable:$true] %s347
      %350 = dma.vmem_to_hbm [thread:$0]  %s346, 128, %s348, [#allocation4]
    $region57: #{tpu_custom_call.1} parent=1 // pred_fallthru
      _
    // Predicated region
    $region58: #{tpu_custom_call.1} parent=1 // pred_check
      _
    $region59: #{tpu_custom_call.1} parent=1 // pred_check_branch
      %352 = sbr.rel (0) target = $region61
    $region60: #{tpu_custom_call.1} parent=1 // pred_region
      %354 = dma.done [#allocation4], 128
    $region61: #{tpu_custom_call.1} parent=1 // pred_fallthru
      _
    %355 = vsyncpa [#allocation3], 1
    %356 = vsyncpa [#allocation6], 1
    %357 = vsyncpa [#allocation4], 1

</llo_original>
